<compile_context>
chip_gen: v5e
topology: v5e:2x2
jax: 0.10.0
libtpu: 0.0.40
codegen_flags: <defaults>
</compile_context>

<pallas_src>
import jax
import jax.numpy as jnp
from jax.experimental import pallas as pl
from jax.experimental.pallas import tpu as pltpu


def _mlp_kernel(x_ref, w1_ref, b1_ref, w2_ref, b2_ref, o_ref):
    # fc1: [TB, E] @ [E, H] -> f32 accumulate on the MXU (bf16 operands by default).
    h = jnp.dot(x_ref[...], w1_ref[...], preferred_element_type=jnp.float32)
    # bias + ReLU in f32 on the VPU.
    h = jnp.maximum(h + b1_ref[...], 0.0)
    # dropout: identity (eval/inference mode).
    # Cast back to the weight dtype so the second MXU pass runs at bf16
    # throughput (no-op when compute_dtype is f32).
    h = h.astype(w2_ref.dtype)
    # fc2: [TB, H] @ [H, C] -> f32 accumulate, bias add in f32.
    out = jnp.dot(h, w2_ref[...], preferred_element_type=jnp.float32)
    out = out + b2_ref[...]
    o_ref[...] = out.astype(o_ref.dtype)


def bert_classifier_forward(embeddings, w1_t, b1, w2_t, b2, *,
                            batch_tile=None,
                            compute_dtype=jnp.bfloat16,
                            out_dtype=jnp.float32,
                            pad_classes_to_lanes=False):
    """Fused forward pass of BERTClassifier (fc1 -> ReLU -> dropout[eval] -> fc2).

    embeddings: [B, E]
    w1_t: [E, H] (fc1 weight, transposed);  b1: [H]
    w2_t: [H, C] (fc2 weight, transposed);  b2: [C]

    Returns logits [B, C] in `out_dtype` (f32 by default).  If
    `pad_classes_to_lanes=True`, returns [B, Cp] with Cp = round_up(C, 128);
    the caller is expected to consume / slice the padded logits itself
    (avoids a separate post-call slice pass over HBM).
    """
    B, E = embeddings.shape
    H = w1_t.shape[1]
    C = w2_t.shape[1]

    # --- bf16 compute by default: f32 matmuls are multi-pass on every MXU
    # generation and double the HBM traffic for x / W1 / W2.  Accumulation and
    # the bias/ReLU path remain f32 inside the kernel; biases stay f32.
    x = embeddings.astype(compute_dtype)
    w1 = w1_t.astype(compute_dtype)
    w2 = w2_t.astype(compute_dtype)
    b1_2d = b1.astype(jnp.float32).reshape(1, H)
    b2_2d = b2.astype(jnp.float32).reshape(1, C)

    # --- Optional lane-dense class padding (unmasked 128-lane stores) at the
    # cost of up to 16x output write volume for tiny C.  Default off: the
    # unpadded [B, C] output avoids both the extra write volume and the
    # post-call slice (an extra HBM pass over the logits).
    Cp = C
    if pad_classes_to_lanes:
        Cp = max(128, ((C + 127) // 128) * 128)
        if Cp != C:
            w2 = jnp.pad(w2, ((0, 0), (0, Cp - C)))
            b2_2d = jnp.pad(b2_2d, ((0, 0), (0, Cp - C)))

    # --- Batch tiling: single grid step for B <= 512 (no per-step overhead),
    # 512-row tiles above that (near HBM roofline; >= 2 "parallel" grid steps
    # at B >= 1024 lets v7x shard the batch across its two TensorCores).
    if batch_tile is None:
        batch_tile = B if B <= 512 else 512
    batch_tile = max(1, min(batch_tile, B))

    # Robustness for batches not divisible by the tile: zero-pad rows and
    # slice them back off afterwards.
    Bp = pl.cdiv(B, batch_tile) * batch_tile
    if Bp != B:
        x = jnp.pad(x, ((0, Bp - B), (0, 0)))

    grid = (Bp // batch_tile,)

    out = pl.pallas_call(
        _mlp_kernel,
        out_shape=jax.ShapeDtypeStruct((Bp, Cp), out_dtype),
        grid_spec=pltpu.PrefetchScalarGridSpec(
            num_scalar_prefetch=0,
            grid=grid,
            in_specs=[
                pl.BlockSpec((batch_tile, E), lambda i: (i, 0)),   # x tile
                # Constant index_maps: weights/biases are DMA'd once and stay
                # resident in VMEM across all grid steps.  At BERT-base sizes
                # on v7x (64 MiB VMEM), add pipeline_mode=pl.Buffered(1) here
                # or tile the H (K) dimension instead of holding it whole.
                pl.BlockSpec((E, H), lambda i: (0, 0)),            # W1^T
                pl.BlockSpec((1, H), lambda i: (0, 0)),            # b1 (f32)
                pl.BlockSpec((H, Cp), lambda i: (0, 0)),           # W2^T
                pl.BlockSpec((1, Cp), lambda i: (0, 0)),           # b2 (f32)
            ],
            out_specs=pl.BlockSpec((batch_tile, Cp), lambda i: (i, 0)),
        ),
        compiler_params=pltpu.CompilerParams(
            dimension_semantics=("parallel",),
            # Generous but safe scoped-VMEM budget: covers 512-1024-row tiles
            # with double-buffering on every generation (<= v7x default).
            vmem_limit_bytes=32 * 1024 * 1024,
        ),
    )(x, w1, b1_2d, w2, b2_2d)

    if Bp != B:
        out = out[:B]
    return out


def _init_linear(key, fan_in, fan_out):
    # Deterministic PyTorch-style init: U(-1/sqrt(fan_in), 1/sqrt(fan_in)).
    kw, kb = jax.random.split(key)
    bound = 1.0 / jnp.sqrt(float(fan_in))
    # Stored already transposed: [in, out]
    w_t = jax.random.uniform(kw, (fan_in, fan_out), jnp.float32, -bound, bound)
    b = jax.random.uniform(kb, (fan_out,), jnp.float32, -bound, bound)
    return w_t, b


if __name__ == "__main__":
    # Module-consistent small shapes: B=16 embeddings of dim 128, 8 classes.
    # Hidden size 512 is fixed by the module definition (nn.Linear(E, 512)).
    B, E, H, C = 16, 128, 512, 8

    key = jax.random.PRNGKey(0)
    k_x, k_fc1, k_fc2 = jax.random.split(key, 3)

    embeddings = jax.random.normal(k_x, (B, E), dtype=jnp.float32)
    w1_t, b1 = _init_linear(k_fc1, E, H)   # fc1: E -> 512
    w2_t, b2 = _init_linear(k_fc2, H, C)   # fc2: 512 -> num_classes

    # Plain-JAX reference of the same forward pass (eval-mode dropout).
    ref = jnp.maximum(embeddings @ w1_t + b1, 0.0) @ w2_t + b2

    # 1) Default path: bf16 compute, f32 accumulate, f32 logits, unpadded C.
    out = bert_classifier_forward(embeddings, w1_t, b1, w2_t, b2)
    out = jax.block_until_ready(out)
    assert out.shape == (B, C)
    assert out.dtype == jnp.float32
    assert jnp.allclose(out, ref, atol=5e-2, rtol=5e-2), "bf16 mismatch vs reference"

    # 2) Full-f32 compute path (exactness check of the fused kernel structure).
    out_f32 = bert_classifier_forward(embeddings, w1_t, b1, w2_t, b2,
                                      compute_dtype=jnp.float32)
    out_f32 = jax.block_until_ready(out_f32)
    assert out_f32.shape == (B, C)
    assert jnp.allclose(out_f32, ref, atol=1e-4, rtol=1e-4), "f32 mismatch vs reference"

    # 3) Lane-dense padded-output variant (benchmark alternative for large B).
    out_pad = bert_classifier_forward(embeddings, w1_t, b1, w2_t, b2,
                                      pad_classes_to_lanes=True)
    out_pad = jax.block_until_ready(out_pad)
    assert out_pad.shape == (B, 128)
    assert jnp.allclose(out_pad[:, :C], ref, atol=5e-2, rtol=5e-2), "padded-C mismatch"

    print("KERNEL_OK")
</pallas_src>

<mosaic_0001>
module attributes {stable_mosaic.version = 11 : i64} {
  func.func @_mlp_kernel(%arg0: i32, %arg1: memref<16x128xbf16, #tpu.memory_space<vmem>>, %arg2: memref<128x512xbf16, #tpu.memory_space<vmem>>, %arg3: memref<1x512xf32, #tpu.memory_space<vmem>>, %arg4: memref<512x8xbf16, #tpu.memory_space<vmem>>, %arg5: memref<1x8xf32, #tpu.memory_space<vmem>>, %arg6: memref<16x8xf32, #tpu.memory_space<vmem>>) attributes {dimension_semantics = [#tpu.dimension_semantics<parallel>], iteration_bounds = array<i64: 1>, scalar_prefetch = 0 : i64, scratch_operands = 0 : i64, tpu.core_type = #tpu.core_type<tc>, window_params = [{transform_indices = @transform_0, window_bounds = array<i64: 16, 128>}, {pipeline_mode = #tpu.pipeline_mode<synchronous>, transform_indices = @transform_1, window_bounds = array<i64: 128, 512>}, {pipeline_mode = #tpu.pipeline_mode<synchronous>, transform_indices = @transform_2, window_bounds = array<i64: 1, 512>}, {pipeline_mode = #tpu.pipeline_mode<synchronous>, transform_indices = @transform_3, window_bounds = array<i64: 512, 8>}, {pipeline_mode = #tpu.pipeline_mode<synchronous>, transform_indices = @transform_4, window_bounds = array<i64: 1, 8>}, {transform_indices = @transform_5, window_bounds = array<i64: 16, 8>}]} {
    %c0 = arith.constant 0 : index
    %c0_0 = arith.constant 0 : index
    %0 = vector.load %arg1[%c0, %c0_0] : memref<16x128xbf16, #tpu.memory_space<vmem>>, vector<16x128xbf16>
    %c0_1 = arith.constant 0 : index
    %c0_2 = arith.constant 0 : index
    %1 = vector.load %arg2[%c0_1, %c0_2] : memref<128x512xbf16, #tpu.memory_space<vmem>>, vector<128x512xbf16>
    %cst = arith.constant dense<0.000000e+00> : vector<16x512xf32>
    %2 = tpu.matmul %0, %1, %cst {dimension_numbers = #tpu.dot_dimension_numbers<[1], [0], [0], [1], [0, 0, 1, 1], [], []>} : vector<16x128xbf16>, vector<128x512xbf16>, vector<16x512xf32> -> vector<16x512xf32>
    %c0_3 = arith.constant 0 : index
    %c0_4 = arith.constant 0 : index
    %3 = vector.load %arg3[%c0_3, %c0_4] : memref<1x512xf32, #tpu.memory_space<vmem>>, vector<1x512xf32>
    %4 = vector.broadcast %3 : vector<1x512xf32> to vector<16x512xf32>
    %5 = arith.addf %2, %4 : vector<16x512xf32>
    %cst_5 = arith.constant 0.000000e+00 : f32
    %6 = vector.broadcast %cst_5 : f32 to vector<16x512xf32>
    %7 = arith.maximumf %5, %6 : vector<16x512xf32>
    %8 = arith.truncf %7 : vector<16x512xf32> to vector<16x512xbf16>
    %c0_6 = arith.constant 0 : index
    %c0_7 = arith.constant 0 : index
    %9 = vector.load %arg4[%c0_6, %c0_7] : memref<512x8xbf16, #tpu.memory_space<vmem>>, vector<512x8xbf16>
    %cst_8 = arith.constant dense<0.000000e+00> : vector<16x8xf32>
    %10 = tpu.matmul %8, %9, %cst_8 {dimension_numbers = #tpu.dot_dimension_numbers<[1], [0], [0], [1], [0, 0, 1, 1], [], []>} : vector<16x512xbf16>, vector<512x8xbf16>, vector<16x8xf32> -> vector<16x8xf32>
    %c0_9 = arith.constant 0 : index
    %c0_10 = arith.constant 0 : index
    %11 = vector.load %arg5[%c0_9, %c0_10] : memref<1x8xf32, #tpu.memory_space<vmem>>, vector<1x8xf32>
    %12 = vector.broadcast %11 : vector<1x8xf32> to vector<16x8xf32>
    %13 = arith.addf %10, %12 : vector<16x8xf32>
    %c0_11 = arith.constant 0 : index
    %c0_12 = arith.constant 0 : index
    %14 = vector.load %arg6[%c0_11, %c0_12] : memref<16x8xf32, #tpu.memory_space<vmem>>, vector<16x8xf32>
    tpu.vector_store %arg6[%c0_11, %c0_12], %13 {strides = array<i32>} : memref<16x8xf32, #tpu.memory_space<vmem>>, vector<16x8xf32>,
    return
  }
  func.func @transform_0(%arg0: i32) -> (i32, i32) {
    %c0_i32 = arith.constant 0 : i32
    %c0_i32_0 = arith.constant 0 : i32
    return %arg0, %c0_i32 : i32, i32
  }
  func.func @transform_1(%arg0: i32) -> (i32, i32) {
    %c0_i32 = arith.constant 0 : i32
    %c0_i32_0 = arith.constant 0 : i32
    %c0_i32_1 = arith.constant 0 : i32
    return %c0_i32, %c0_i32_0 : i32, i32
  }
  func.func @transform_2(%arg0: i32) -> (i32, i32) {
    %c0_i32 = arith.constant 0 : i32
    %c0_i32_0 = arith.constant 0 : i32
    %c0_i32_1 = arith.constant 0 : i32
    return %c0_i32, %c0_i32_0 : i32, i32
  }
  func.func @transform_3(%arg0: i32) -> (i32, i32) {
    %c0_i32 = arith.constant 0 : i32
    %c0_i32_0 = arith.constant 0 : i32
    %c0_i32_1 = arith.constant 0 : i32
    return %c0_i32, %c0_i32_0 : i32, i32
  }
  func.func @transform_4(%arg0: i32) -> (i32, i32) {
    %c0_i32 = arith.constant 0 : i32
    %c0_i32_0 = arith.constant 0 : i32
    %c0_i32_1 = arith.constant 0 : i32
    return %c0_i32, %c0_i32_0 : i32, i32
  }
  func.func @transform_5(%arg0: i32) -> (i32, i32) {
    %c0_i32 = arith.constant 0 : i32
    %c0_i32_0 = arith.constant 0 : i32
    return %arg0, %c0_i32 : i32, i32
  }
}

</mosaic_0001>

<llo_original>
// kernel: tpu_custom_call.1
$region0: #{tpu_custom_call.1}
  #allocation0 [shape = 'u32[]', space=smem, size = 0x4, offset = 0x4, fixed_abs, tag = 'smem constant byte address 0x4 - core index']
  #allocation1 [shape = 'u32[72,128]{1,0:T(1,128)}', space=vmem, size = 0x9000, scoped, tag = 'internal scratch']
  %s0 = inlined_call_operand.vmem [shape: bf16[16,128], index: 0, kind: input, shape index: {}]
  %s1 = inlined_call_operand.vmem [shape: bf16[128,512], index: 1, kind: input, shape index: {}]
  %s2 = inlined_call_operand.vmem [shape: f32[1,512], index: 2, kind: input, shape index: {}]
  %s3 = inlined_call_operand.vmem [shape: bf16[512,8], index: 3, kind: input, shape index: {}]
  %s4 = inlined_call_operand.vmem [shape: f32[1,8], index: 4, kind: input, shape index: {}]
  %s5 = inlined_call_operand.vmem [shape: f32[16,8], index: 5, kind: output, shape index: {}]
  %s6 = sld [smem:[#allocation0]]
  $region30: #{tpu_custom_call.1} parent=0
    _
  %s8 = ssub.s32 1, %s6
  %s9 = scalar_select 0, %s8, %s6
  // Predicated region
  $region2: #{tpu_custom_call.1} parent=0 // pred_check
    _
  $region3: #{tpu_custom_call.1} parent=0 // pred_check_branch
    %11 = sbr.rel (0) target = $region5
  $region4: #{tpu_custom_call.1} parent=0 // pred_region
    _
  $region5: #{tpu_custom_call.1} parent=0 // pred_fallthru
    _
  // Predicated region
  $region6: #{tpu_custom_call.1} parent=0 // pred_check
    _
  $region7: #{tpu_custom_call.1} parent=0 // pred_check_branch
    %13 = sbr.rel (0) target = $region9
  $region8: #{tpu_custom_call.1} parent=0 // pred_region
    _
  $region9: #{tpu_custom_call.1} parent=0 // pred_fallthru
    _
  // Predicated region
  $region10: #{tpu_custom_call.1} parent=0 // pred_check
    _
  $region11: #{tpu_custom_call.1} parent=0 // pred_check_branch
    %15 = sbr.rel (0) target = $region13
  $region12: #{tpu_custom_call.1} parent=0 // pred_region
    _
  $region13: #{tpu_custom_call.1} parent=0 // pred_fallthru
    _
  // Predicated region
  $region14: #{tpu_custom_call.1} parent=0 // pred_check
    _
  $region15: #{tpu_custom_call.1} parent=0 // pred_check_branch
    %17 = sbr.rel (0) target = $region17
  $region16: #{tpu_custom_call.1} parent=0 // pred_region
    _
  $region17: #{tpu_custom_call.1} parent=0 // pred_fallthru
    _
  // Predicated region
  $region18: #{tpu_custom_call.1} parent=0 // pred_check
    _
  $region19: #{tpu_custom_call.1} parent=0 // pred_check_branch
    %19 = sbr.rel (0) target = $region21
  $region20: #{tpu_custom_call.1} parent=0 // pred_region
    _
  $region21: #{tpu_custom_call.1} parent=0 // pred_fallthru
    _
  %v20 = vld [vmem:[%s0] sm:$0xf]
  %v21 = vld [vmem:[%s0 + $0x4] sm:$0xf]
  %v22 = vld [vmem:[%s1] sm:$0xff]
  %v23 = vld [vmem:[%s1 + $0x8] sm:$0xff]
  %v24 = vld [vmem:[%s1 + $0x10] sm:$0xff]
  %v25 = vld [vmem:[%s1 + $0x18] sm:$0xff]
  %v26 = vld [vmem:[%s1 + $0x20] sm:$0xff]
  %v27 = vld [vmem:[%s1 + $0x28] sm:$0xff]
  %v28 = vld [vmem:[%s1 + $0x30] sm:$0xff]
  %v29 = vld [vmem:[%s1 + $0x38] sm:$0xff]
  %v30 = vld [vmem:[%s1 + $0x40] sm:$0xff]
  %v31 = vld [vmem:[%s1 + $0x48] sm:$0xff]
  %v32 = vld [vmem:[%s1 + $0x50] sm:$0xff]
  %v33 = vld [vmem:[%s1 + $0x58] sm:$0xff]
  %v34 = vld [vmem:[%s1 + $0x60] sm:$0xff]
  %v35 = vld [vmem:[%s1 + $0x68] sm:$0xff]
  %v36 = vld [vmem:[%s1 + $0x70] sm:$0xff]
  %v37 = vld [vmem:[%s1 + $0x78] sm:$0xff]
  %v38 = vld [vmem:[%s1 + $0x80] sm:$0xff]
  %v39 = vld [vmem:[%s1 + $0x88] sm:$0xff]
  %v40 = vld [vmem:[%s1 + $0x90] sm:$0xff]
  %v41 = vld [vmem:[%s1 + $0x98] sm:$0xff]
  %v42 = vld [vmem:[%s1 + $0xa0] sm:$0xff]
  %v43 = vld [vmem:[%s1 + $0xa8] sm:$0xff]
  %v44 = vld [vmem:[%s1 + $0xb0] sm:$0xff]
  %v45 = vld [vmem:[%s1 + $0xb8] sm:$0xff]
  %v46 = vld [vmem:[%s1 + $0xc0] sm:$0xff]
  %v47 = vld [vmem:[%s1 + $0xc8] sm:$0xff]
  %v48 = vld [vmem:[%s1 + $0xd0] sm:$0xff]
  %v49 = vld [vmem:[%s1 + $0xd8] sm:$0xff]
  %v50 = vld [vmem:[%s1 + $0xe0] sm:$0xff]
  %v51 = vld [vmem:[%s1 + $0xe8] sm:$0xff]
  %v52 = vld [vmem:[%s1 + $0xf0] sm:$0xff]
  %v53 = vld [vmem:[%s1 + $0xf8] sm:$0xff]
  %v54 = vld [vmem:[%s2] sm:$0xf]
  %v56 = vperm.slane %v54, 0
  %v57 = vperm.slane %v54, 1
  %v58 = vperm.slane %v54, 2
  %v59 = vperm.slane %v54, 3
  %v66 = vunpack.c.l.b16 %v20
  %v67 = vunpack.c.l.b16 %v21
  %v68 = vpack.c.b16 %v67, %v66
  %v102 = vunpack.c.l.b16 %v22
  %v103 = vunpack.c.h.b16 %v22
  %v104 = vunpack.c.l.b16 %v23
  %v105 = vunpack.c.h.b16 %v23
  %v106 = vunpack.c.l.b16 %v24
  %v107 = vunpack.c.h.b16 %v24
  %v108 = vunpack.c.l.b16 %v25
  %v109 = vunpack.c.h.b16 %v25
  %v110 = vunpack.c.l.b16 %v26
  %v111 = vunpack.c.h.b16 %v26
  %v112 = vunpack.c.l.b16 %v27
  %v113 = vunpack.c.h.b16 %v27
  %v114 = vunpack.c.l.b16 %v28
  %v115 = vunpack.c.h.b16 %v28
  %v116 = vunpack.c.l.b16 %v29
  %v117 = vunpack.c.h.b16 %v29
  %v118 = vunpack.c.l.b16 %v30
  %v119 = vunpack.c.h.b16 %v30
  %v120 = vunpack.c.l.b16 %v31
  %v121 = vunpack.c.h.b16 %v31
  %v122 = vunpack.c.l.b16 %v32
  %v123 = vunpack.c.h.b16 %v32
  %v124 = vunpack.c.l.b16 %v33
  %v125 = vunpack.c.h.b16 %v33
  %v126 = vunpack.c.l.b16 %v34
  %v127 = vunpack.c.h.b16 %v34
  %v128 = vunpack.c.l.b16 %v35
  %v129 = vunpack.c.h.b16 %v35
  %v130 = vunpack.c.l.b16 %v36
  %v131 = vunpack.c.h.b16 %v36
  %v132 = vunpack.c.l.b16 %v37
  %v133 = vunpack.c.h.b16 %v37
  %v134 = vunpack.c.l.b16 %v38
  %v135 = vunpack.c.h.b16 %v38
  %v136 = vunpack.c.l.b16 %v39
  %v137 = vunpack.c.h.b16 %v39
  %v138 = vunpack.c.l.b16 %v40
  %v139 = vunpack.c.h.b16 %v40
  %v140 = vunpack.c.l.b16 %v41
  %v141 = vunpack.c.h.b16 %v41
  %v142 = vunpack.c.l.b16 %v42
  %v143 = vunpack.c.h.b16 %v42
  %v144 = vunpack.c.l.b16 %v43
  %v145 = vunpack.c.h.b16 %v43
  %v146 = vunpack.c.l.b16 %v44
  %v147 = vunpack.c.h.b16 %v44
  %v148 = vunpack.c.l.b16 %v45
  %v149 = vunpack.c.h.b16 %v45
  %v150 = vunpack.c.l.b16 %v46
  %v151 = vunpack.c.h.b16 %v46
  %v152 = vunpack.c.l.b16 %v47
  %v153 = vunpack.c.h.b16 %v47
  %v154 = vunpack.c.l.b16 %v48
  %v155 = vunpack.c.h.b16 %v48
  %v156 = vunpack.c.l.b16 %v49
  %v157 = vunpack.c.h.b16 %v49
  %v158 = vunpack.c.l.b16 %v50
  %v159 = vunpack.c.h.b16 %v50
  %v160 = vunpack.c.l.b16 %v51
  %v161 = vunpack.c.h.b16 %v51
  %v162 = vunpack.c.l.b16 %v52
  %v163 = vunpack.c.h.b16 %v52
  %v164 = vunpack.c.l.b16 %v53
  %v165 = vunpack.c.h.b16 %v53
  %v166 = vpack.c.b16 %v106, %v102
  %v167 = vpack.c.b16 %v107, %v103
  %v168 = vpack.c.b16 %v108, %v104
  %v169 = vpack.c.b16 %v109, %v105
  %v170 = vpack.c.b16 %v114, %v110
  %v171 = vpack.c.b16 %v115, %v111
  %v172 = vpack.c.b16 %v116, %v112
  %v173 = vpack.c.b16 %v117, %v113
  %v174 = vpack.c.b16 %v122, %v118
  %v175 = vpack.c.b16 %v123, %v119
  %v176 = vpack.c.b16 %v124, %v120
  %v177 = vpack.c.b16 %v125, %v121
  %v178 = vpack.c.b16 %v130, %v126
  %v179 = vpack.c.b16 %v131, %v127
  %v180 = vpack.c.b16 %v132, %v128
  %v181 = vpack.c.b16 %v133, %v129
  %v182 = vpack.c.b16 %v138, %v134
  %v183 = vpack.c.b16 %v139, %v135
  %v184 = vpack.c.b16 %v140, %v136
  %v185 = vpack.c.b16 %v141, %v137
  %v186 = vpack.c.b16 %v146, %v142
  %v187 = vpack.c.b16 %v147, %v143
  %v188 = vpack.c.b16 %v148, %v144
  %v189 = vpack.c.b16 %v149, %v145
  %v190 = vpack.c.b16 %v154, %v150
  %v191 = vpack.c.b16 %v155, %v151
  %v192 = vpack.c.b16 %v156, %v152
  %v193 = vpack.c.b16 %v157, %v153
  %v194 = vpack.c.b16 %v162, %v158
  %v195 = vpack.c.b16 %v163, %v159
  %v196 = vpack.c.b16 %v164, %v160
  %v197 = vpack.c.b16 %v165, %v161
  %230 = vmatpush.bf16.msra.mxu0 %v194
  %231 = vmatpush.bf16.msra.mxu0 %v190
  %232 = vmatpush.bf16.msra.mxu0 %v186
  %233 = vmatpush.bf16.msra.mxu0 %v182
  %234 = vmatpush.bf16.msra.mxu0 %v178
  %235 = vmatpush.bf16.msra.mxu0 %v174
  %236 = vmatpush.bf16.msra.mxu0 %v170
  %237 = vmatpush.bf16.msra.mxu0 %v166
  %238 = vmatmul.bf16.gmra.mxu0 %v68
  %v239 = vpop.f32.mrf.mxu0
  %v240 = vadd.f32 %v56, %v239
  %v241 = vpop.f32.mrf.mxu0
  %v242 = vadd.f32 %v56, %v241
  %243 = vdwg.mxu0
  %244 = vmatpush.bf16.msra.mxu0 %v195
  %245 = vmatpush.bf16.msra.mxu0 %v191
  %246 = vmatpush.bf16.msra.mxu0 %v187
  %247 = vmatpush.bf16.msra.mxu0 %v183
  %248 = vmatpush.bf16.msra.mxu0 %v179
  %249 = vmatpush.bf16.msra.mxu0 %v175
  %250 = vmatpush.bf16.msra.mxu0 %v171
  %251 = vmatpush.bf16.msra.mxu0 %v167
  %252 = vmatmul.bf16.gmra.mxu0 %v68
  %v253 = vpop.f32.mrf.mxu0
  %v254 = vadd.f32 %v57, %v253
  %v255 = vpop.f32.mrf.mxu0
  %v256 = vadd.f32 %v57, %v255
  %257 = vdwg.mxu0
  %258 = vmatpush.bf16.msra.mxu0 %v196
  %259 = vmatpush.bf16.msra.mxu0 %v192
  %260 = vmatpush.bf16.msra.mxu0 %v188
  %261 = vmatpush.bf16.msra.mxu0 %v184
  %262 = vmatpush.bf16.msra.mxu0 %v180
  %263 = vmatpush.bf16.msra.mxu0 %v176
  %264 = vmatpush.bf16.msra.mxu0 %v172
  %265 = vmatpush.bf16.msra.mxu0 %v168
  %266 = vmatmul.bf16.gmra.mxu0 %v68
  %v267 = vpop.f32.mrf.mxu0
  %v268 = vadd.f32 %v58, %v267
  %v269 = vpop.f32.mrf.mxu0
  %v270 = vadd.f32 %v58, %v269
  %271 = vdwg.mxu0
  %272 = vmatpush.bf16.msra.mxu0 %v197
  %273 = vmatpush.bf16.msra.mxu0 %v193
  %274 = vmatpush.bf16.msra.mxu0 %v189
  %275 = vmatpush.bf16.msra.mxu0 %v185
  %276 = vmatpush.bf16.msra.mxu0 %v181
  %277 = vmatpush.bf16.msra.mxu0 %v177
  %278 = vmatpush.bf16.msra.mxu0 %v173
  %279 = vmatpush.bf16.msra.mxu0 %v169
  %280 = vmatmul.bf16.gmra.mxu0 %v68
  %v281 = vpop.f32.mrf.mxu0
  %v282 = vadd.f32 %v59, %v281
  %v283 = vpop.f32.mrf.mxu0
  %v284 = vadd.f32 %v59, %v283
  %285 = vdwg.mxu0
  %v286 = vmax.f32 %v240, 0.0
  %v287 = vmax.f32 %v254, 0.0
  %v288 = vmax.f32 %v268, 0.0
  %v289 = vmax.f32 %v282, 0.0
  %v290 = vmax.f32 %v242, 0.0
  %v291 = vmax.f32 %v256, 0.0
  %v292 = vmax.f32 %v270, 0.0
  %v293 = vmax.f32 %v284, 0.0
  %v294 = vpack.c.bf16 %v290, %v286
  %v295 = vpack.c.bf16 %v291, %v287
  %v296 = vpack.c.bf16 %v292, %v288
  %v297 = vpack.c.bf16 %v293, %v289
  %v298 = vld [vmem:[%s3] sm:$0xf]
  %v299 = vld [vmem:[%s3 + $0x4] sm:$0xf]
  %v300 = vld [vmem:[%s3 + $0x8] sm:$0xf]
  %v301 = vld [vmem:[%s3 + $0xc] sm:$0xf]
  %v302 = vld [vmem:[%s3 + $0x10] sm:$0xf]
  %v303 = vld [vmem:[%s3 + $0x14] sm:$0xf]
  %v304 = vld [vmem:[%s3 + $0x18] sm:$0xf]
  %v305 = vld [vmem:[%s3 + $0x1c] sm:$0xf]
  %v306 = vld [vmem:[%s3 + $0x20] sm:$0xf]
  %v307 = vld [vmem:[%s3 + $0x24] sm:$0xf]
  %v308 = vld [vmem:[%s3 + $0x28] sm:$0xf]
  %v309 = vld [vmem:[%s3 + $0x2c] sm:$0xf]
  %v310 = vld [vmem:[%s3 + $0x30] sm:$0xf]
  %v311 = vld [vmem:[%s3 + $0x34] sm:$0xf]
  %v312 = vld [vmem:[%s3 + $0x38] sm:$0xf]
  %v313 = vld [vmem:[%s3 + $0x3c] sm:$0xf]
  %v314 = vld [vmem:[%s3 + $0x40] sm:$0xf]
  %v315 = vld [vmem:[%s3 + $0x44] sm:$0xf]
  %v316 = vld [vmem:[%s3 + $0x48] sm:$0xf]
  %v317 = vld [vmem:[%s3 + $0x4c] sm:$0xf]
  %v318 = vld [vmem:[%s3 + $0x50] sm:$0xf]
  %v319 = vld [vmem:[%s3 + $0x54] sm:$0xf]
  %v320 = vld [vmem:[%s3 + $0x58] sm:$0xf]
  %v321 = vld [vmem:[%s3 + $0x5c] sm:$0xf]
  %v322 = vld [vmem:[%s3 + $0x60] sm:$0xf]
  %v323 = vld [vmem:[%s3 + $0x64] sm:$0xf]
  %v324 = vld [vmem:[%s3 + $0x68] sm:$0xf]
  %v325 = vld [vmem:[%s3 + $0x6c] sm:$0xf]
  %v326 = vld [vmem:[%s3 + $0x70] sm:$0xf]
  %v327 = vld [vmem:[%s3 + $0x74] sm:$0xf]
  %v328 = vld [vmem:[%s3 + $0x78] sm:$0xf]
  %v329 = vld [vmem:[%s3 + $0x7c] sm:$0xf]
  %v330 = vld [vmem:[%s3 + $0x80] sm:$0xf]
  %v331 = vld [vmem:[%s3 + $0x84] sm:$0xf]
  %v332 = vld [vmem:[%s3 + $0x88] sm:$0xf]
  %v333 = vld [vmem:[%s3 + $0x8c] sm:$0xf]
  %v334 = vld [vmem:[%s3 + $0x90] sm:$0xf]
  %v335 = vld [vmem:[%s3 + $0x94] sm:$0xf]
  %v336 = vld [vmem:[%s3 + $0x98] sm:$0xf]
  %v337 = vld [vmem:[%s3 + $0x9c] sm:$0xf]
  %v338 = vld [vmem:[%s3 + $0xa0] sm:$0xf]
  %v339 = vld [vmem:[%s3 + $0xa4] sm:$0xf]
  %v340 = vld [vmem:[%s3 + $0xa8] sm:$0xf]
  %v341 = vld [vmem:[%s3 + $0xac] sm:$0xf]
  %v342 = vld [vmem:[%s3 + $0xb0] sm:$0xf]
  %v343 = vld [vmem:[%s3 + $0xb4] sm:$0xf]
  %v344 = vld [vmem:[%s3 + $0xb8] sm:$0xf]
  %v345 = vld [vmem:[%s3 + $0xbc] sm:$0xf]
  %v346 = vld [vmem:[%s3 + $0xc0] sm:$0xf]
  %v347 = vld [vmem:[%s3 + $0xc4] sm:$0xf]
  %v348 = vld [vmem:[%s3 + $0xc8] sm:$0xf]
  %v349 = vld [vmem:[%s3 + $0xcc] sm:$0xf]
  %v350 = vld [vmem:[%s3 + $0xd0] sm:$0xf]
  %v351 = vld [vmem:[%s3 + $0xd4] sm:$0xf]
  %v352 = vld [vmem:[%s3 + $0xd8] sm:$0xf]
  %v353 = vld [vmem:[%s3 + $0xdc] sm:$0xf]
  %v354 = vld [vmem:[%s3 + $0xe0] sm:$0xf]
  %v355 = vld [vmem:[%s3 + $0xe4] sm:$0xf]
  %v356 = vld [vmem:[%s3 + $0xe8] sm:$0xf]
  %v357 = vld [vmem:[%s3 + $0xec] sm:$0xf]
  %v358 = vld [vmem:[%s3 + $0xf0] sm:$0xf]
  %v359 = vld [vmem:[%s3 + $0xf4] sm:$0xf]
  %v360 = vld [vmem:[%s3 + $0xf8] sm:$0xf]
  %v361 = vld [vmem:[%s3 + $0xfc] sm:$0xf]
  %v362 = vld [vmem:[%s4] sm:$0x1]
  %v364 = vperm.slane %v362, 0
  %v430 = vunpack.c.l.b16 %v298
  %v431 = vunpack.c.l.b16 %v299
  %v432 = vunpack.c.l.b16 %v300
  %v433 = vunpack.c.l.b16 %v301
  %v434 = vunpack.c.l.b16 %v302
  %v435 = vunpack.c.l.b16 %v303
  %v436 = vunpack.c.l.b16 %v304
  %v437 = vunpack.c.l.b16 %v305
  %v438 = vunpack.c.l.b16 %v306
  %v439 = vunpack.c.l.b16 %v307
  %v440 = vunpack.c.l.b16 %v308
  %v441 = vunpack.c.l.b16 %v309
  %v442 = vunpack.c.l.b16 %v310
  %v443 = vunpack.c.l.b16 %v311
  %v444 = vunpack.c.l.b16 %v312
  %v445 = vunpack.c.l.b16 %v313
  %v446 = vunpack.c.l.b16 %v314
  %v447 = vunpack.c.l.b16 %v315
  %v448 = vunpack.c.l.b16 %v316
  %v449 = vunpack.c.l.b16 %v317
  %v450 = vunpack.c.l.b16 %v318
  %v451 = vunpack.c.l.b16 %v319
  %v452 = vunpack.c.l.b16 %v320
  %v453 = vunpack.c.l.b16 %v321
  %v454 = vunpack.c.l.b16 %v322
  %v455 = vunpack.c.l.b16 %v323
  %v456 = vunpack.c.l.b16 %v324
  %v457 = vunpack.c.l.b16 %v325
  %v458 = vunpack.c.l.b16 %v326
  %v459 = vunpack.c.l.b16 %v327
  %v460 = vunpack.c.l.b16 %v328
  %v461 = vunpack.c.l.b16 %v329
  %v462 = vunpack.c.l.b16 %v330
  %v463 = vunpack.c.l.b16 %v331
  %v464 = vunpack.c.l.b16 %v332
  %v465 = vunpack.c.l.b16 %v333
  %v466 = vunpack.c.l.b16 %v334
  %v467 = vunpack.c.l.b16 %v335
  %v468 = vunpack.c.l.b16 %v336
  %v469 = vunpack.c.l.b16 %v337
  %v470 = vunpack.c.l.b16 %v338
  %v471 = vunpack.c.l.b16 %v339
  %v472 = vunpack.c.l.b16 %v340
  %v473 = vunpack.c.l.b16 %v341
  %v474 = vunpack.c.l.b16 %v342
  %v475 = vunpack.c.l.b16 %v343
  %v476 = vunpack.c.l.b16 %v344
  %v477 = vunpack.c.l.b16 %v345
  %v478 = vunpack.c.l.b16 %v346
  %v479 = vunpack.c.l.b16 %v347
  %v480 = vunpack.c.l.b16 %v348
  %v481 = vunpack.c.l.b16 %v349
  %v482 = vunpack.c.l.b16 %v350
  %v483 = vunpack.c.l.b16 %v351
  %v484 = vunpack.c.l.b16 %v352
  %v485 = vunpack.c.l.b16 %v353
  %v486 = vunpack.c.l.b16 %v354
  %v487 = vunpack.c.l.b16 %v355
  %v488 = vunpack.c.l.b16 %v356
  %v489 = vunpack.c.l.b16 %v357
  %v490 = vunpack.c.l.b16 %v358
  %v491 = vunpack.c.l.b16 %v359
  %v492 = vunpack.c.l.b16 %v360
  %v493 = vunpack.c.l.b16 %v361
  %v494 = vpack.c.b16 %v431, %v430
  %v495 = vpack.c.b16 %v433, %v432
  %v496 = vpack.c.b16 %v435, %v434
  %v497 = vpack.c.b16 %v437, %v436
  %v498 = vpack.c.b16 %v439, %v438
  %v499 = vpack.c.b16 %v441, %v440
  %v500 = vpack.c.b16 %v443, %v442
  %v501 = vpack.c.b16 %v445, %v444
  %v502 = vpack.c.b16 %v447, %v446
  %v503 = vpack.c.b16 %v449, %v448
  %v504 = vpack.c.b16 %v451, %v450
  %v505 = vpack.c.b16 %v453, %v452
  %v506 = vpack.c.b16 %v455, %v454
  %v507 = vpack.c.b16 %v457, %v456
  %v508 = vpack.c.b16 %v459, %v458
  %v509 = vpack.c.b16 %v461, %v460
  %v510 = vpack.c.b16 %v463, %v462
  %v511 = vpack.c.b16 %v465, %v464
  %v512 = vpack.c.b16 %v467, %v466
  %v513 = vpack.c.b16 %v469, %v468
  %v514 = vpack.c.b16 %v471, %v470
  %v515 = vpack.c.b16 %v473, %v472
  %v516 = vpack.c.b16 %v475, %v474
  %v517 = vpack.c.b16 %v477, %v476
  %v518 = vpack.c.b16 %v479, %v478
  %v519 = vpack.c.b16 %v481, %v480
  %v520 = vpack.c.b16 %v483, %v482
  %v521 = vpack.c.b16 %v485, %v484
  %v522 = vpack.c.b16 %v487, %v486
  %v523 = vpack.c.b16 %v489, %v488
  %v524 = vpack.c.b16 %v491, %v490
  %v525 = vpack.c.b16 %v493, %v492
  %558 = vmatpush.bf16.msra.mxu0 %v501
  %559 = vmatpush.bf16.msra.mxu0 %v500
  %560 = vmatpush.bf16.msra.mxu0 %v499
  %561 = vmatpush.bf16.msra.mxu0 %v498
  %562 = vmatpush.bf16.msra.mxu0 %v497
  %563 = vmatpush.bf16.msra.mxu0 %v496
  %564 = vmatpush.bf16.msra.mxu0 %v495
  %565 = vmatpush.bf16.msra.mxu0 %v494
  %566 = vmatmul.bf16.gmra.mxu0 %v294
  %v567 = vpop.f32.mrf.mxu0
  %v568 = vadd.f32 %v364, %v567
  %v569 = vpop.f32.mrf.mxu0
  %v570 = vadd.f32 %v364, %v569
  %571 = vdwg.mxu0
  %572 = vmatpush.bf16.msra.mxu0 %v509
  %573 = vmatpush.bf16.msra.mxu0 %v508
  %574 = vmatpush.bf16.msra.mxu0 %v507
  %575 = vmatpush.bf16.msra.mxu0 %v506
  %576 = vmatpush.bf16.msra.mxu0 %v505
  %577 = vmatpush.bf16.msra.mxu0 %v504
  %578 = vmatpush.bf16.msra.mxu0 %v503
  %579 = vmatpush.bf16.msra.mxu0 %v502
  %580 = vmatmul.bf16.gmra.mxu0 %v295
  %v581 = vpop.f32.mrf.mxu0
  %v582 = vadd.f32 %v568, %v581
  %v583 = vpop.f32.mrf.mxu0
  %v584 = vadd.f32 %v570, %v583
  %585 = vdwg.mxu0
  %586 = vmatpush.bf16.msra.mxu0 %v517
  %587 = vmatpush.bf16.msra.mxu0 %v516
  %588 = vmatpush.bf16.msra.mxu0 %v515
  %589 = vmatpush.bf16.msra.mxu0 %v514
  %590 = vmatpush.bf16.msra.mxu0 %v513
  %591 = vmatpush.bf16.msra.mxu0 %v512
  %592 = vmatpush.bf16.msra.mxu0 %v511
  %593 = vmatpush.bf16.msra.mxu0 %v510
  %594 = vmatmul.bf16.gmra.mxu0 %v296
  %v595 = vpop.f32.mrf.mxu0
  %v596 = vadd.f32 %v582, %v595
  %v597 = vpop.f32.mrf.mxu0
  %v598 = vadd.f32 %v584, %v597
  %599 = vdwg.mxu0
  %600 = vmatpush.bf16.msra.mxu0 %v525
  %601 = vmatpush.bf16.msra.mxu0 %v524
  %602 = vmatpush.bf16.msra.mxu0 %v523
  %603 = vmatpush.bf16.msra.mxu0 %v522
  %604 = vmatpush.bf16.msra.mxu0 %v521
  %605 = vmatpush.bf16.msra.mxu0 %v520
  %606 = vmatpush.bf16.msra.mxu0 %v519
  %607 = vmatpush.bf16.msra.mxu0 %v518
  %608 = vmatmul.bf16.gmra.mxu0 %v297
  %v609 = vpop.f32.mrf.mxu0
  %v610 = vadd.f32 %v596, %v609
  %v611 = vpop.f32.mrf.mxu0
  %v612 = vadd.f32 %v598, %v611
  %613 = vdwg.mxu0
  %vm614 = vcmask 64512
  %615 = vst.msk [vmem:[%s5] sm:$0xff] %vm614, %v610
  %616 = vst.msk [vmem:[%s5 + $0x8] sm:$0xff] %vm614, %v612
  // Predicated region
  $region22: #{tpu_custom_call.1} parent=0 // pred_check
    _
  $region23: #{tpu_custom_call.1} parent=0 // pred_check_branch
    %618 = sbr.rel (0) target = $region25
  $region24: #{tpu_custom_call.1} parent=0 // pred_region
    _
  $region25: #{tpu_custom_call.1} parent=0 // pred_fallthru
    _
  // Predicated region
  $region26: #{tpu_custom_call.1} parent=0 // pred_check
    _
  $region27: #{tpu_custom_call.1} parent=0 // pred_check_branch
    %620 = sbr.rel (0) target = $region29
  $region28: #{tpu_custom_call.1} parent=0 // pred_region
    _
  $region29: #{tpu_custom_call.1} parent=0 // pred_fallthru
    _

</llo_original>
